<compile_context>
chip_gen: v5e
topology: v5e:2x2
jax: 0.10.0
libtpu: 0.0.40
codegen_flags: <defaults>
</compile_context>

<pallas_src>
import functools

import jax
import jax.numpy as jnp
import numpy as np
from jax.experimental import pallas as pl
from jax.experimental.pallas import tpu as pltpu

SUBLANE = 8  # f32 sublane granularity (second-to-last dim)


def _round_up(x, m):
    return (x + m - 1) // m * m


def _mlp2_kernel(x_ref, w1_ref, b1_ref, w2_ref, b2_ref, o_ref):
    # Layer 1: x @ W1 + b1, ReLU.  MXU matmul with f32 accumulation; bias-add
    # and ReLU in f32 on the VPU.
    h = jnp.dot(x_ref[...], w1_ref[...], preferred_element_type=jnp.float32)
    h = jnp.maximum(h + b1_ref[...].astype(jnp.float32), 0.0)
    # Layer 2: h @ W2 + b2 (no activation on the output layer).  If weights are
    # bf16, h is downcast to bf16 for the MXU (documented numerics deviation).
    out = jnp.dot(h.astype(w2_ref.dtype), w2_ref[...],
                  preferred_element_type=jnp.float32)
    out = out + b2_ref[...].astype(jnp.float32)
    o_ref[...] = out.astype(o_ref.dtype)


@functools.partial(jax.jit, static_argnames=("tile_b", "single_buffer_weights"))
def mlp_forward(x, w1, b1, w2, b2, *, tile_b=512, single_buffer_weights=False):
    """x: [B, D_in], w1: [D_in, H], b1: [1, H], w2: [H, D_out], b2: [1, D_out]."""
    B, D_in = x.shape
    H = w1.shape[1]
    D_out = w2.shape[1]

    # Batch tile: multiple of 8 sublanes, capped at ceil(B/2) so the parallel
    # batch axis has >= 2 tiles whenever B allows it (v7x dual-TC sharding).
    tb = min(tile_b, _round_up(pl.cdiv(B, 2), SUBLANE))
    tb = max(SUBLANE, _round_up(tb, SUBLANE))
    grid = (pl.cdiv(B, tb),)

    # Constant-index weight/bias blocks are DMA'd once and stay VMEM-resident
    # across the batch grid.  Optionally single-buffer them (v7x VMEM saver).
    resident_kwargs = {}
    if single_buffer_weights:
        try:
            pl.BlockSpec((1, 1), lambda i: (0, 0), pipeline_mode=pl.Buffered(1))
            resident_kwargs = dict(pipeline_mode=pl.Buffered(1))
        except TypeError:
            resident_kwargs = {}

    def resident_spec(shape):
        return pl.BlockSpec(shape, lambda i: (0, 0), **resident_kwargs)

    # VMEM budget: weights/biases (x1 or x2 buffers) + double-buffered
    # activation & output tiles + f32 hidden tile + headroom, clamped so the
    # request is valid on every chip (<= 64 MiB physical on v7x).
    param_bytes = sum(int(a.size) * a.dtype.itemsize for a in (w1, b1, w2, b2))
    wbuf = 1 if resident_kwargs else 2
    stream_bytes = 2 * tb * (D_in + D_out) * x.dtype.itemsize
    hidden_bytes = tb * H * 4
    needed = wbuf * param_bytes + stream_bytes + hidden_bytes
    vmem_limit = int(min(max(needed + (8 << 20), 32 << 20), 64 << 20))

    cost = pl.CostEstimate(
        flops=2 * B * (D_in * H + H * D_out),
        transcendentals=0,
        bytes_accessed=int(x.size) * x.dtype.itemsize
        + param_bytes
        + B * D_out * x.dtype.itemsize,
    )

    return pl.pallas_call(
        _mlp2_kernel,
        out_shape=jax.ShapeDtypeStruct((B, D_out), x.dtype),
        grid_spec=pltpu.PrefetchScalarGridSpec(
            num_scalar_prefetch=0,
            grid=grid,
            in_specs=[
                # Activations: one (tb, D_in) tile per grid step (auto-pipelined,
                # ragged last tile handled by Pallas).
                pl.BlockSpec((tb, D_in), lambda i: (i, 0)),
                # Weights / biases: whole-array blocks, VMEM-resident.
                resident_spec((D_in, H)),
                resident_spec((1, H)),
                resident_spec((H, D_out)),
                resident_spec((1, D_out)),
            ],
            out_specs=pl.BlockSpec((tb, D_out), lambda i: (i, 0)),
        ),
        compiler_params=pltpu.CompilerParams(
            dimension_semantics=("parallel",),  # batch tiles are independent
            vmem_limit_bytes=vmem_limit,
        ),
        cost_estimate=cost,
    )(x, w1, b1, w2, b2)


def init_mlp_params(key, input_dim, hidden_dim, output_dim, dtype=jnp.float32):
    """Deterministic init mimicking nn.Linear's default U(-1/sqrt(fan_in), +...).

    Use dtype=jnp.bfloat16 on v6e/v7x for ~2x MXU throughput and half the
    weight HBM/VMEM footprint.
    """
    k1, k2, k3, k4 = jax.random.split(key, 4)
    bound1 = 1.0 / np.sqrt(input_dim)
    bound2 = 1.0 / np.sqrt(hidden_dim)
    w1 = jax.random.uniform(k1, (input_dim, hidden_dim), dtype, -bound1, bound1)
    b1 = jax.random.uniform(k2, (1, hidden_dim), dtype, -bound1, bound1)
    w2 = jax.random.uniform(k3, (hidden_dim, output_dim), dtype, -bound2, bound2)
    b2 = jax.random.uniform(k4, (1, output_dim), dtype, -bound2, bound2)
    return w1, b1, w2, b2


def mlp_reference(x, w1, b1, w2, b2):
    h = jnp.maximum(x @ w1 + b1, 0.0)
    return h @ w2 + b2


if __name__ == "__main__":
    # MLPModule(input_dim=16, hidden_dim=32, output_dim=8, num_layers=2, act_fn=nn.ReLU)
    # TODO(synk): kernel fuses exactly num_layers=2 (the module default); deeper
    # MLPs would need a loop of fused layer pairs.
    # Note: at this toy size the Pallas call is pure fixed overhead vs. XLA's
    # fused jnp path; it pays off once B and the feature dims are large enough
    # to be memory/MXU bound (or when many MLP instances are stacked on the
    # batch axis and fed through one pallas_call).
    batch, input_dim, hidden_dim, output_dim = 8, 16, 32, 8

    key = jax.random.PRNGKey(0)
    kx, kp = jax.random.split(key)
    x = jax.random.normal(kx, (batch, input_dim), dtype=jnp.float32)
    w1, b1, w2, b2 = init_mlp_params(kp, input_dim, hidden_dim, output_dim)

    out = mlp_forward(x, w1, b1, w2, b2)
    out = jax.block_until_ready(out)

    ref = mlp_reference(x, w1, b1, w2, b2)
    np.testing.assert_allclose(np.asarray(out), np.asarray(ref), rtol=1e-5, atol=1e-5)

    print("KERNEL_OK")
</pallas_src>

<mosaic_0001>
module attributes {stable_mosaic.version = 11 : i64} {
  func.func @_mlp2_kernel(%arg0: i32, %arg1: memref<8x16xf32, #tpu.memory_space<vmem>>, %arg2: memref<16x32xf32, #tpu.memory_space<vmem>>, %arg3: memref<1x32xf32, #tpu.memory_space<vmem>>, %arg4: memref<32x8xf32, #tpu.memory_space<vmem>>, %arg5: memref<1x8xf32, #tpu.memory_space<vmem>>, %arg6: memref<8x8xf32, #tpu.memory_space<vmem>>) attributes {dimension_semantics = [#tpu.dimension_semantics<parallel>], iteration_bounds = array<i64: 1>, scalar_prefetch = 0 : i64, scratch_operands = 0 : i64, tpu.core_type = #tpu.core_type<tc>, window_params = [{transform_indices = @transform_0, window_bounds = array<i64: 8, 16>}, {pipeline_mode = #tpu.pipeline_mode<synchronous>, transform_indices = @transform_1, window_bounds = array<i64: 16, 32>}, {pipeline_mode = #tpu.pipeline_mode<synchronous>, transform_indices = @transform_2, window_bounds = array<i64: 1, 32>}, {pipeline_mode = #tpu.pipeline_mode<synchronous>, transform_indices = @transform_3, window_bounds = array<i64: 32, 8>}, {pipeline_mode = #tpu.pipeline_mode<synchronous>, transform_indices = @transform_4, window_bounds = array<i64: 1, 8>}, {transform_indices = @transform_5, window_bounds = array<i64: 8, 8>}]} {
    %c0 = arith.constant 0 : index
    %c0_0 = arith.constant 0 : index
    %0 = vector.load %arg1[%c0, %c0_0] : memref<8x16xf32, #tpu.memory_space<vmem>>, vector<8x16xf32>
    %c0_1 = arith.constant 0 : index
    %c0_2 = arith.constant 0 : index
    %1 = vector.load %arg2[%c0_1, %c0_2] : memref<16x32xf32, #tpu.memory_space<vmem>>, vector<16x32xf32>
    %cst = arith.constant dense<0.000000e+00> : vector<8x32xf32>
    %2 = tpu.matmul %0, %1, %cst {dimension_numbers = #tpu.dot_dimension_numbers<[1], [0], [0], [1], [0, 0, 1, 1], [], []>} : vector<8x16xf32>, vector<16x32xf32>, vector<8x32xf32> -> vector<8x32xf32>
    %c0_3 = arith.constant 0 : index
    %c0_4 = arith.constant 0 : index
    %3 = vector.load %arg3[%c0_3, %c0_4] : memref<1x32xf32, #tpu.memory_space<vmem>>, vector<1x32xf32>
    %4 = vector.broadcast %3 : vector<1x32xf32> to vector<8x32xf32>
    %5 = arith.addf %2, %4 : vector<8x32xf32>
    %cst_5 = arith.constant 0.000000e+00 : f32
    %6 = vector.broadcast %cst_5 : f32 to vector<8x32xf32>
    %7 = arith.maximumf %5, %6 : vector<8x32xf32>
    %c0_6 = arith.constant 0 : index
    %c0_7 = arith.constant 0 : index
    %8 = vector.load %arg4[%c0_6, %c0_7] : memref<32x8xf32, #tpu.memory_space<vmem>>, vector<32x8xf32>
    %cst_8 = arith.constant dense<0.000000e+00> : vector<8x8xf32>
    %9 = tpu.matmul %7, %8, %cst_8 {dimension_numbers = #tpu.dot_dimension_numbers<[1], [0], [0], [1], [0, 0, 1, 1], [], []>} : vector<8x32xf32>, vector<32x8xf32>, vector<8x8xf32> -> vector<8x8xf32>
    %c0_9 = arith.constant 0 : index
    %c0_10 = arith.constant 0 : index
    %10 = vector.load %arg5[%c0_9, %c0_10] : memref<1x8xf32, #tpu.memory_space<vmem>>, vector<1x8xf32>
    %11 = vector.broadcast %10 : vector<1x8xf32> to vector<8x8xf32>
    %12 = arith.addf %9, %11 : vector<8x8xf32>
    %c0_11 = arith.constant 0 : index
    %c0_12 = arith.constant 0 : index
    %13 = vector.load %arg6[%c0_11, %c0_12] : memref<8x8xf32, #tpu.memory_space<vmem>>, vector<8x8xf32>
    tpu.vector_store %arg6[%c0_11, %c0_12], %12 {strides = array<i32>} : memref<8x8xf32, #tpu.memory_space<vmem>>, vector<8x8xf32>,
    return
  }
  func.func @transform_0(%arg0: i32) -> (i32, i32) {
    %c0_i32 = arith.constant 0 : i32
    %c0_i32_0 = arith.constant 0 : i32
    return %arg0, %c0_i32 : i32, i32
  }
  func.func @transform_1(%arg0: i32) -> (i32, i32) {
    %c0_i32 = arith.constant 0 : i32
    %c0_i32_0 = arith.constant 0 : i32
    %c0_i32_1 = arith.constant 0 : i32
    return %c0_i32, %c0_i32_0 : i32, i32
  }
  func.func @transform_2(%arg0: i32) -> (i32, i32) {
    %c0_i32 = arith.constant 0 : i32
    %c0_i32_0 = arith.constant 0 : i32
    %c0_i32_1 = arith.constant 0 : i32
    return %c0_i32, %c0_i32_0 : i32, i32
  }
  func.func @transform_3(%arg0: i32) -> (i32, i32) {
    %c0_i32 = arith.constant 0 : i32
    %c0_i32_0 = arith.constant 0 : i32
    %c0_i32_1 = arith.constant 0 : i32
    return %c0_i32, %c0_i32_0 : i32, i32
  }
  func.func @transform_4(%arg0: i32) -> (i32, i32) {
    %c0_i32 = arith.constant 0 : i32
    %c0_i32_0 = arith.constant 0 : i32
    %c0_i32_1 = arith.constant 0 : i32
    return %c0_i32, %c0_i32_0 : i32, i32
  }
  func.func @transform_5(%arg0: i32) -> (i32, i32) {
    %c0_i32 = arith.constant 0 : i32
    %c0_i32_0 = arith.constant 0 : i32
    return %arg0, %c0_i32 : i32, i32
  }
}

</mosaic_0001>

<llo_original>
// kernel: mlp_forward.1
$region0: #{mlp_forward.1}
  #allocation0 [shape = 'u32[]', space=smem, size = 0x4, offset = 0x4, fixed_abs, tag = 'smem constant byte address 0x4 - core index']
  #allocation1 [shape = 'u32[72,128]{1,0:T(1,128)}', space=vmem, size = 0x9000, scoped, tag = 'internal scratch']
  %s0 = inlined_call_operand.vmem [shape: f32[8,16], index: 0, kind: input, shape index: {}]
  %s1 = inlined_call_operand.vmem [shape: f32[16,32], index: 1, kind: input, shape index: {}]
  %s2 = inlined_call_operand.vmem [shape: f32[1,32], index: 2, kind: input, shape index: {}]
  %s3 = inlined_call_operand.vmem [shape: f32[32,8], index: 3, kind: input, shape index: {}]
  %s4 = inlined_call_operand.vmem [shape: f32[1,8], index: 4, kind: input, shape index: {}]
  %s5 = inlined_call_operand.hbm [shape: f32[8,8], index: 5, kind: output, shape index: {}]
  %s6 = sld [smem:[#allocation0]]
  $region30: #{mlp_forward.1} parent=0
    _
  %s8 = ssub.s32 1, %s6
  %s9 = scalar_select 0, %s8, %s6
  $region1: #{mlp_forward.1} parent=0
    #allocation2 [shape = 'u8[4096]{0}', space=vmem, size = 0x1000, scoped, tag = 'output window, operand 0, single buffered']
    #allocation3 [shape = 's32[1]{0}', space=sflag, size = 0x4, scoped, tag = 'scoped memory for mlp_forward.1']
    %10 = vsyncpa [#allocation3], 0
    // Predicated region
    $region2: #{mlp_forward.1} parent=1 // pred_check
      _
    $region3: #{mlp_forward.1} parent=1 // pred_check_branch
      %12 = sbr.rel (0) target = $region5
    $region4: #{mlp_forward.1} parent=1 // pred_region
      _
    $region5: #{mlp_forward.1} parent=1 // pred_fallthru
      _
    // Predicated region
    $region6: #{mlp_forward.1} parent=1 // pred_check
      _
    $region7: #{mlp_forward.1} parent=1 // pred_check_branch
      %14 = sbr.rel (0) target = $region9
    $region8: #{mlp_forward.1} parent=1 // pred_region
      _
    $region9: #{mlp_forward.1} parent=1 // pred_fallthru
      _
    // Predicated region
    $region10: #{mlp_forward.1} parent=1 // pred_check
      _
    $region11: #{mlp_forward.1} parent=1 // pred_check_branch
      %16 = sbr.rel (0) target = $region13
    $region12: #{mlp_forward.1} parent=1 // pred_region
      _
    $region13: #{mlp_forward.1} parent=1 // pred_fallthru
      _
    // Predicated region
    $region14: #{mlp_forward.1} parent=1 // pred_check
      _
    $region15: #{mlp_forward.1} parent=1 // pred_check_branch
      %18 = sbr.rel (0) target = $region17
    $region16: #{mlp_forward.1} parent=1 // pred_region
      _
    $region17: #{mlp_forward.1} parent=1 // pred_fallthru
      _
    // Predicated region
    $region18: #{mlp_forward.1} parent=1 // pred_check
      _
    $region19: #{mlp_forward.1} parent=1 // pred_check_branch
      %20 = sbr.rel (0) target = $region21
    $region20: #{mlp_forward.1} parent=1 // pred_region
      _
    $region21: #{mlp_forward.1} parent=1 // pred_fallthru
      _
    %v21 = vld [vmem:[%s0] sm:$0xff]
    %v22 = vld [vmem:[%s1] sm:$0xff]
    %v23 = vld [vmem:[%s1 + $0x8] sm:$0xff]
    %v24 = vld [vmem:[%s2] sm:$0x1]
    %v26 = vperm.slane %v24, 0
    %vm28 = vcmask 130048
    %v30 = vsel %vm28, %v21, 0
    %32 = vmatpush.msra.mxu0 0.0
    %33 = vmatpush.msra.mxu0 0.0
    %34 = vmatpush.msra.mxu0 0.0
    %35 = vmatpush.msra.mxu0 0.0
    %36 = vmatpush.msra.mxu0 0.0
    %37 = vmatpush.msra.mxu0 0.0
    %38 = vmatpush.msra.mxu0 0.0
    %39 = vmatpush.msra.mxu0 0.0
    %40 = vmatpush.msra.mxu0 0.0
    %41 = vmatpush.msra.mxu0 0.0
    %42 = vmatpush.msra.mxu0 0.0
    %43 = vmatpush.msra.mxu0 0.0
    %44 = vmatpush.msra.mxu0 0.0
    %45 = vmatpush.msra.mxu0 0.0
    %46 = vmatpush.msra.mxu0 %v23
    %47 = vmatpush.msra.mxu0 %v22
    %48 = vmatmul.f32.gmra.mxu0 %v30
    %v49 = vpop.f32.mrf.mxu0
    %v50 = vadd.f32 %v26, %v49
    %51 = vdwg.mxu0
    %v52 = vmax.f32 %v50, 0.0
    %v53 = vld [vmem:[%s3] sm:$0xff]
    %v54 = vld [vmem:[%s3 + $0x8] sm:$0xff]
    %v55 = vld [vmem:[%s3 + $0x10] sm:$0xff]
    %v56 = vld [vmem:[%s3 + $0x18] sm:$0xff]
    %v57 = vld [vmem:[%s4] sm:$0x1]
    %v59 = vperm.slane %v57, 0
    %vm61 = vcmask 261120
    %v63 = vsel %vm61, %v52, 0
    %65 = vmatpush.msra.mxu0 0.0
    %66 = vmatpush.msra.mxu0 0.0
    %67 = vmatpush.msra.mxu0 0.0
    %68 = vmatpush.msra.mxu0 0.0
    %69 = vmatpush.msra.mxu0 0.0
    %70 = vmatpush.msra.mxu0 0.0
    %71 = vmatpush.msra.mxu0 0.0
    %72 = vmatpush.msra.mxu0 0.0
    %73 = vmatpush.msra.mxu0 0.0
    %74 = vmatpush.msra.mxu0 0.0
    %75 = vmatpush.msra.mxu0 0.0
    %76 = vmatpush.msra.mxu0 0.0
    %77 = vmatpush.msra.mxu0 %v56
    %78 = vmatpush.msra.mxu0 %v55
    %79 = vmatpush.msra.mxu0 %v54
    %80 = vmatpush.msra.mxu0 %v53
    %81 = vmatmul.f32.gmra.mxu0 %v63
    %v82 = vpop.f32.mrf.mxu0
    %v83 = vadd.f32 %v59, %v82
    %84 = vdwg.mxu0
    %vm85 = vcmask 64512
    %86 = vst.msk [vmem:[#allocation2] sm:$0xff] %vm85, %v83
    // Predicated region
    $region22: #{mlp_forward.1} parent=1 // pred_check
      _
    $region23: #{mlp_forward.1} parent=1 // pred_check_branch
      %88 = sbr.rel (0) target = $region25
    $region24: #{mlp_forward.1} parent=1 // pred_region
      %90 = vsyncadd [#allocation3], 0
      %s92 = sshll.u32 [#allocation2], 4
      %s93 = int_to_ptr.vmem [resolvable:$true] %s92
      %s94 = sshll.u32 %s5, 4
      %s95 = int_to_ptr.hbm [resolvable:$true] %s94
      %97 = dma.vmem_to_hbm [thread:$0]  %s93, 128, %s95, [#allocation3]
    $region25: #{mlp_forward.1} parent=1 // pred_fallthru
      _
    // Predicated region
    $region26: #{mlp_forward.1} parent=1 // pred_check
      _
    $region27: #{mlp_forward.1} parent=1 // pred_check_branch
      %99 = sbr.rel (0) target = $region29
    $region28: #{mlp_forward.1} parent=1 // pred_region
      %101 = dma.done [#allocation3], 128
    $region29: #{mlp_forward.1} parent=1 // pred_fallthru
      _
    %102 = vsyncpa [#allocation3], 1

</llo_original>
